<compile_context>
chip_gen: v7x
topology: tpu7x:2x2x1
jax: 0.10.0
libtpu: 0.0.40
codegen_flags: <defaults>
</compile_context>

<pallas_src>
import functools

import jax
import jax.numpy as jnp
from jax.experimental import pallas as pl
from jax.experimental.pallas import tpu as pltpu


def _encoder_kernel(x_ref, w1_ref, b1_ref, w2f_ref, b2f_ref,
                    y_ref, probs_ref, *, compute_dtype):
    cd = compute_dtype

    x = x_ref[...].astype(cd)

    # encoder[0]: Linear(input_d, 2*model_d) + Sigmoid  (f32 accumulate)
    h = jnp.dot(x, w1_ref[...].astype(cd),
                preferred_element_type=jnp.float32) + b1_ref[...]
    h = jax.nn.sigmoid(h)          # stays f32 on the VPU/EUP

    # encoder[2] + fake_embed folded:  y = h @ (w2 @ wf) + (b2 @ wf)
    y = jnp.dot(h.astype(cd), w2f_ref[...].astype(cd),
                preferred_element_type=jnp.float32) + b2f_ref[...]
    y_ref[...] = y

    # saved_probs side effect: softmax over the last dim (f32 stats).
    m = jnp.max(y, axis=-1, keepdims=True)
    e = jnp.exp(y - m)
    inv = pl.reciprocal(jnp.sum(e, axis=-1, keepdims=True), approx=True)
    probs_ref[...] = e * inv


def encoder_forward(x, params, *, block_rows=1024, compute_dtype=jnp.float32):
    """Returns (y, saved_probs) where y is the module's forward() output."""
    B, S, input_d = x.shape
    two_md = params["w1"].shape[1]
    model_d = params["w2"].shape[1]

    # Fold fake_embed into the second linear (tiny host-side matmuls).
    w2f = params["w2"] @ params["wf"]           # (2*model_d, model_d)
    b2f = params["b2"] @ params["wf"]           # (1, model_d)

    n = B * S
    xf = x.reshape(n, input_d)

    # Clamp the row tile to the problem size (multiple of 8 sublanes) so small
    # inputs run in one grid step and large inputs get big, MXU-filling tiles.
    n_up8 = ((n + 7) // 8) * 8
    block_rows = max(8, min(block_rows, n_up8))
    block_rows = (block_rows // 8) * 8

    n_pad = ((n + block_rows - 1) // block_rows) * block_rows
    pad = n_pad - n
    if pad:
        # Only taken when B*S doesn't divide the tile; padded rows are garbage
        # and are sliced off below.
        xf = jnp.pad(xf, ((0, pad), (0, 0)))

    kernel = functools.partial(_encoder_kernel, compute_dtype=compute_dtype)
    const = lambda i: (0, 0)      # weights: resident, same block every step
    rows = lambda i: (i, 0)

    y, probs = pl.pallas_call(
        kernel,
        out_shape=(jax.ShapeDtypeStruct((n_pad, model_d), jnp.float32),
                   jax.ShapeDtypeStruct((n_pad, model_d), jnp.float32)),
        grid=(n_pad // block_rows,),
        in_specs=[
            pl.BlockSpec((block_rows, input_d), rows),
            pl.BlockSpec((input_d, two_md), const),
            pl.BlockSpec((1, two_md), const),
            pl.BlockSpec((two_md, model_d), const),
            pl.BlockSpec((1, model_d), const),
        ],
        out_specs=(
            pl.BlockSpec((block_rows, model_d), rows),
            pl.BlockSpec((block_rows, model_d), rows),
        ),
        compiler_params=pltpu.CompilerParams(
            dimension_semantics=(pltpu.PARALLEL,),
            vmem_limit_bytes=32 * 1024 * 1024,
        ),
    )(xf, params["w1"], params["b1"], w2f, b2f)

    if pad:
        y = y[:n]
        probs = probs[:n]
    y = y.reshape(B, S, model_d)
    probs = probs.reshape(B, S, model_d)
    return y, probs


def reference_forward(x, p):
    """Pure-JAX mirror of the PyTorch Encoder.forward (use_embedding=False)."""
    B, S, input_d = x.shape
    xf = x.reshape(-1, input_d)
    h = jax.nn.sigmoid(xf @ p["w1"] + p["b1"])
    h2 = h @ p["w2"] + p["b2"]
    y = h2 @ p["wf"]
    probs = jax.nn.softmax(y, axis=-1)
    return y.reshape(B, S, -1), probs.reshape(B, S, -1)


def make_params(key, input_d, model_d):
    """Weights stored pre-transposed (in_features, out_features)."""
    ks = jax.random.split(key, 5)
    f32 = jnp.float32
    s = 0.1
    return {
        "w1": jax.random.normal(ks[0], (input_d, 2 * model_d), f32) * s,
        "b1": jax.random.normal(ks[1], (1, 2 * model_d), f32) * s,
        "w2": jax.random.normal(ks[2], (2 * model_d, model_d), f32) * s,
        "b2": jax.random.normal(ks[3], (1, model_d), f32) * s,
        "wf": jax.random.normal(ks[4], (model_d, model_d), f32) * s,
    }


if __name__ == "__main__":
    # Small config consistent with the module: batch=2, seq=8,
    # input_d=16, model_d=32 (k_neck=8 is unused in the executed path).
    B, S, INPUT_D, MODEL_D = 2, 8, 16, 32

    key = jax.random.PRNGKey(0)
    kx, kp = jax.random.split(key)
    x = jax.random.normal(kx, (B, S, INPUT_D), jnp.float32)
    params = make_params(kp, INPUT_D, MODEL_D)

    out, probs = encoder_forward(x, params)
    out = jax.block_until_ready(out)
    probs = jax.block_until_ready(probs)

    ref_out, ref_probs = reference_forward(x, params)
    err = float(jnp.max(jnp.abs(out - ref_out)))
    perr = float(jnp.max(jnp.abs(probs - ref_probs)))

    assert out.shape == (B, S, MODEL_D), out.shape
    assert probs.shape == (B, S, MODEL_D), probs.shape
    assert err < 1e-3, f"forward max abs err {err}"
    assert perr < 5e-3, f"saved_probs max abs err {perr}"
    print("KERNEL_OK")
</pallas_src>

<mosaic_0001>
module attributes {stable_mosaic.version = 11 : i64} {
  func.func @_encoder_kernel(%arg0: i32, %arg1: memref<16x16xf32, #tpu.memory_space<vmem>>, %arg2: memref<16x64xf32, #tpu.memory_space<vmem>>, %arg3: memref<1x64xf32, #tpu.memory_space<vmem>>, %arg4: memref<64x32xf32, #tpu.memory_space<vmem>>, %arg5: memref<1x32xf32, #tpu.memory_space<vmem>>, %arg6: memref<16x32xf32, #tpu.memory_space<vmem>>, %arg7: memref<16x32xf32, #tpu.memory_space<vmem>>) attributes {dimension_semantics = [#tpu.dimension_semantics<parallel>], iteration_bounds = array<i64: 1>, scalar_prefetch = 0 : i64, scratch_operands = 0 : i64, tpu.core_type = #tpu.core_type<tc>, window_params = [{transform_indices = @transform_0, window_bounds = array<i64: 16, 16>}, {pipeline_mode = #tpu.pipeline_mode<synchronous>, transform_indices = @transform_1, window_bounds = array<i64: 16, 64>}, {pipeline_mode = #tpu.pipeline_mode<synchronous>, transform_indices = @transform_2, window_bounds = array<i64: 1, 64>}, {pipeline_mode = #tpu.pipeline_mode<synchronous>, transform_indices = @transform_3, window_bounds = array<i64: 64, 32>}, {pipeline_mode = #tpu.pipeline_mode<synchronous>, transform_indices = @transform_4, window_bounds = array<i64: 1, 32>}, {transform_indices = @transform_5, window_bounds = array<i64: 16, 32>}, {transform_indices = @transform_6, window_bounds = array<i64: 16, 32>}]} {
    %c0 = arith.constant 0 : index
    %c0_0 = arith.constant 0 : index
    %0 = vector.load %arg1[%c0, %c0_0] : memref<16x16xf32, #tpu.memory_space<vmem>>, vector<16x16xf32>
    %c0_1 = arith.constant 0 : index
    %c0_2 = arith.constant 0 : index
    %1 = vector.load %arg2[%c0_1, %c0_2] : memref<16x64xf32, #tpu.memory_space<vmem>>, vector<16x64xf32>
    %cst = arith.constant dense<0.000000e+00> : vector<16x64xf32>
    %2 = tpu.matmul %0, %1, %cst {dimension_numbers = #tpu.dot_dimension_numbers<[1], [0], [0], [1], [0, 0, 1, 1], [], []>} : vector<16x16xf32>, vector<16x64xf32>, vector<16x64xf32> -> vector<16x64xf32>
    %c0_3 = arith.constant 0 : index
    %c0_4 = arith.constant 0 : index
    %3 = vector.load %arg3[%c0_3, %c0_4] : memref<1x64xf32, #tpu.memory_space<vmem>>, vector<1x64xf32>
    %4 = vector.broadcast %3 : vector<1x64xf32> to vector<16x64xf32>
    %5 = arith.addf %2, %4 : vector<16x64xf32>
    %6 = arith.negf %5 : vector<16x64xf32>
    %7 = math.exp %6 : vector<16x64xf32>
    %cst_5 = arith.constant 1.000000e+00 : f32
    %8 = vector.broadcast %cst_5 : f32 to vector<16x64xf32>
    %9 = arith.addf %8, %7 : vector<16x64xf32>
    %10 = arith.divf %8, %9 : vector<16x64xf32>
    %c0_6 = arith.constant 0 : index
    %c0_7 = arith.constant 0 : index
    %11 = vector.load %arg4[%c0_6, %c0_7] : memref<64x32xf32, #tpu.memory_space<vmem>>, vector<64x32xf32>
    %cst_8 = arith.constant dense<0.000000e+00> : vector<16x32xf32>
    %12 = tpu.matmul %10, %11, %cst_8 {dimension_numbers = #tpu.dot_dimension_numbers<[1], [0], [0], [1], [0, 0, 1, 1], [], []>} : vector<16x64xf32>, vector<64x32xf32>, vector<16x32xf32> -> vector<16x32xf32>
    %c0_9 = arith.constant 0 : index
    %c0_10 = arith.constant 0 : index
    %13 = vector.load %arg5[%c0_9, %c0_10] : memref<1x32xf32, #tpu.memory_space<vmem>>, vector<1x32xf32>
    %14 = vector.broadcast %13 : vector<1x32xf32> to vector<16x32xf32>
    %15 = arith.addf %12, %14 : vector<16x32xf32>
    %c0_11 = arith.constant 0 : index
    %c0_12 = arith.constant 0 : index
    %16 = vector.load %arg6[%c0_11, %c0_12] : memref<16x32xf32, #tpu.memory_space<vmem>>, vector<16x32xf32>
    tpu.vector_store %arg6[%c0_11, %c0_12], %15 {strides = array<i32>} : memref<16x32xf32, #tpu.memory_space<vmem>>, vector<16x32xf32>,
    %cst_13 = arith.constant dense<0xFF800000> : vector<16xf32>
    %17 = vector.multi_reduction <maximumf>, %15, %cst_13 [1] : vector<16x32xf32> to vector<16xf32>
    %18 = vector.shape_cast %17 : vector<16xf32> to vector<16x1xf32>
    %19 = vector.broadcast %18 : vector<16x1xf32> to vector<16x32xf32>
    %20 = arith.subf %15, %19 : vector<16x32xf32>
    %21 = math.exp %20 : vector<16x32xf32>
    %cst_14 = arith.constant dense<0.000000e+00> : vector<16xf32>
    %22 = vector.multi_reduction <add>, %21, %cst_14 [1] : vector<16x32xf32> to vector<16xf32>
    %23 = vector.shape_cast %22 : vector<16xf32> to vector<16x1xf32>
    %24 = tpu.reciprocal %23 {approx = true} : vector<16x1xf32> -> vector<16x1xf32>
    %25 = vector.broadcast %24 : vector<16x1xf32> to vector<16x32xf32>
    %26 = arith.mulf %21, %25 : vector<16x32xf32>
    %c0_15 = arith.constant 0 : index
    %c0_16 = arith.constant 0 : index
    %27 = vector.load %arg7[%c0_15, %c0_16] : memref<16x32xf32, #tpu.memory_space<vmem>>, vector<16x32xf32>
    tpu.vector_store %arg7[%c0_15, %c0_16], %26 {strides = array<i32>} : memref<16x32xf32, #tpu.memory_space<vmem>>, vector<16x32xf32>,
    return
  }
  func.func @transform_0(%arg0: i32) -> (i32, i32) {
    %c0_i32 = arith.constant 0 : i32
    %c0_i32_0 = arith.constant 0 : i32
    return %arg0, %c0_i32 : i32, i32
  }
  func.func @transform_1(%arg0: i32) -> (i32, i32) {
    %c0_i32 = arith.constant 0 : i32
    %c0_i32_0 = arith.constant 0 : i32
    %c0_i32_1 = arith.constant 0 : i32
    return %c0_i32, %c0_i32_0 : i32, i32
  }
  func.func @transform_2(%arg0: i32) -> (i32, i32) {
    %c0_i32 = arith.constant 0 : i32
    %c0_i32_0 = arith.constant 0 : i32
    %c0_i32_1 = arith.constant 0 : i32
    return %c0_i32, %c0_i32_0 : i32, i32
  }
  func.func @transform_3(%arg0: i32) -> (i32, i32) {
    %c0_i32 = arith.constant 0 : i32
    %c0_i32_0 = arith.constant 0 : i32
    %c0_i32_1 = arith.constant 0 : i32
    return %c0_i32, %c0_i32_0 : i32, i32
  }
  func.func @transform_4(%arg0: i32) -> (i32, i32) {
    %c0_i32 = arith.constant 0 : i32
    %c0_i32_0 = arith.constant 0 : i32
    %c0_i32_1 = arith.constant 0 : i32
    return %c0_i32, %c0_i32_0 : i32, i32
  }
  func.func @transform_5(%arg0: i32) -> (i32, i32) {
    %c0_i32 = arith.constant 0 : i32
    %c0_i32_0 = arith.constant 0 : i32
    return %arg0, %c0_i32 : i32, i32
  }
  func.func @transform_6(%arg0: i32) -> (i32, i32) {
    %c0_i32 = arith.constant 0 : i32
    %c0_i32_0 = arith.constant 0 : i32
    return %arg0, %c0_i32 : i32, i32
  }
}

</mosaic_0001>

<llo_original>
// kernel: tpu_custom_call.1
$region0: #{tpu_custom_call.1}
  #allocation0 [shape = 'u32[]', space=smem, size = 0x4, offset = 0x4, fixed_abs, tag = 'smem constant byte address 0x4 - core index']
  #allocation1 [shape = 'u32[144,128]{1,0:T(1,128)}', space=vmem, size = 0x12000, scoped, tag = 'internal scratch']
  %s0 = inlined_call_operand.vmem [shape: f32[16,16], index: 0, kind: input, shape index: {}]
  %s1 = inlined_call_operand.vmem [shape: f32[16,64], index: 1, kind: input, shape index: {}]
  %s2 = inlined_call_operand.vmem [shape: f32[1,64], index: 2, kind: input, shape index: {}]
  %s3 = inlined_call_operand.vmem [shape: f32[64,32], index: 3, kind: input, shape index: {}]
  %s4 = inlined_call_operand.vmem [shape: f32[1,32], index: 4, kind: input, shape index: {}]
  %s5 = inlined_call_operand.hbm [shape: f32[16,32], index: 5, kind: output, shape index: {0}]
  %s6 = inlined_call_operand.hbm [shape: f32[16,32], index: 6, kind: output, shape index: {1}]
  %7 = xla_tuple %s5, %s6
  %s8 = sld [smem:[#allocation0]]
  $region38: #{tpu_custom_call.1} parent=0
    _
  %s10 = ssub.s32 1, %s8
  %s11 = scalar_select 0, %s10, %s8
  $region1: #{tpu_custom_call.1} parent=0
    #allocation2 [shape = 'u8[8192]{0}', space=vmem, size = 0x2000, scoped, tag = 'output window, operand 0, single buffered']
    #allocation3 [shape = 's32[1]{0}', space=sflag, size = 0x4, scoped, tag = 'scoped memory for tpu_custom_call.1']
    #allocation4 [shape = 'u8[8192]{0}', space=vmem, size = 0x2000, scoped, tag = 'output window, operand 1, single buffered']
    #allocation5 [shape = 's32[1]{0}', space=sflag, size = 0x4, scoped, tag = 'scoped memory for tpu_custom_call.1']
    %12 = vsyncpa [#allocation3], 0
    %13 = vsyncpa [#allocation5], 0
    // Predicated region
    $region2: #{tpu_custom_call.1} parent=1 // pred_check
      _
    $region3: #{tpu_custom_call.1} parent=1 // pred_check_branch
      %15 = sbr.rel (0) target = $region5
    $region4: #{tpu_custom_call.1} parent=1 // pred_region
      _
    $region5: #{tpu_custom_call.1} parent=1 // pred_fallthru
      _
    // Predicated region
    $region6: #{tpu_custom_call.1} parent=1 // pred_check
      _
    $region7: #{tpu_custom_call.1} parent=1 // pred_check_branch
      %17 = sbr.rel (0) target = $region9
    $region8: #{tpu_custom_call.1} parent=1 // pred_region
      _
    $region9: #{tpu_custom_call.1} parent=1 // pred_fallthru
      _
    // Predicated region
    $region10: #{tpu_custom_call.1} parent=1 // pred_check
      _
    $region11: #{tpu_custom_call.1} parent=1 // pred_check_branch
      %19 = sbr.rel (0) target = $region13
    $region12: #{tpu_custom_call.1} parent=1 // pred_region
      _
    $region13: #{tpu_custom_call.1} parent=1 // pred_fallthru
      _
    // Predicated region
    $region14: #{tpu_custom_call.1} parent=1 // pred_check
      _
    $region15: #{tpu_custom_call.1} parent=1 // pred_check_branch
      %21 = sbr.rel (0) target = $region17
    $region16: #{tpu_custom_call.1} parent=1 // pred_region
      _
    $region17: #{tpu_custom_call.1} parent=1 // pred_fallthru
      _
    // Predicated region
    $region18: #{tpu_custom_call.1} parent=1 // pred_check
      _
    $region19: #{tpu_custom_call.1} parent=1 // pred_check_branch
      %23 = sbr.rel (0) target = $region21
    $region20: #{tpu_custom_call.1} parent=1 // pred_region
      _
    $region21: #{tpu_custom_call.1} parent=1 // pred_fallthru
      _
    %v24 = vld [vmem:[%s0] sm:$0xff]
    %v25 = vld [vmem:[%s0 + $0x8] sm:$0xff]
    %v26 = vld [vmem:[%s1] sm:$0xff]
    %v27 = vld [vmem:[%s1 + $0x8] sm:$0xff]
    %v28 = vld [vmem:[%s2] sm:$0x1]
    %v30 = vlaneseq
    %v31 = vshrl.u32 %v30, 7
    %v32 = vsub.s32 0, %v31
    %v33 = vrot.slane %v28, %v32
    %vm35 = vcmask 130048
    %v37 = vsel %vm35, %v24, 0
    %v40 = vsel %vm35, %v25, 0
    %42 = vmatprep.subr.mxu0 0.0
    %43 = vmatpush1.msra.mxu0 %v26
    %44 = vmatprep.subr.mxu0 0.0
    %45 = vmatpush1.msra.mxu0 %v27
    %46 = vmatprep.subr.mxu0 0.0
    %47 = vmatpush1.msra.mxu0 0.0
    %48 = vmatprep.subr.mxu0 0.0
    %49 = vmatpush1.msra.mxu0 0.0
    %50 = vmatprep.subr.mxu0 0.0
    %51 = vmatpush1.msra.mxu0 0.0
    %52 = vmatprep.subr.mxu0 0.0
    %53 = vmatpush1.msra.mxu0 0.0
    %54 = vmatprep.subr.mxu0 0.0
    %55 = vmatpush1.msra.mxu0 0.0
    %56 = vmatprep.subr.mxu0 0.0
    %57 = vmatpush1.msra.mxu0 0.0
    %58 = vmatprep.subr.mxu0 0.0
    %59 = vmatpush1.msra.mxu0 0.0
    %60 = vmatprep.subr.mxu0 0.0
    %61 = vmatpush1.msra.mxu0 0.0
    %62 = vmatprep.subr.mxu0 0.0
    %63 = vmatpush1.msra.mxu0 0.0
    %64 = vmatprep.subr.mxu0 0.0
    %65 = vmatpush1.msra.mxu0 0.0
    %66 = vmatprep.subr.mxu0 0.0
    %67 = vmatpush1.msra.mxu0 0.0
    %68 = vmatprep.subr.mxu0 0.0
    %69 = vmatpush1.msra.mxu0 0.0
    %70 = vmatprep.subr.mxu0 0.0
    %71 = vmatpush1.msra.mxu0 0.0
    %72 = vmatprep.subr.mxu0 0.0
    %73 = vmatpush1.msra.mxu0 0.0
    %74 = vmatprep.subr.mxu0 0.0
    %75 = vmatpush1.msra.mxu0 0.0
    %76 = vmatprep.subr.mxu0 0.0
    %77 = vmatpush1.msra.mxu0 0.0
    %78 = vmatprep.subr.mxu0 0.0
    %79 = vmatpush1.msra.mxu0 0.0
    %80 = vmatprep.subr.mxu0 0.0
    %81 = vmatpush1.msra.mxu0 0.0
    %82 = vmatprep.subr.mxu0 0.0
    %83 = vmatpush1.msra.mxu0 0.0
    %84 = vmatprep.subr.mxu0 0.0
    %85 = vmatpush1.msra.mxu0 0.0
    %86 = vmatprep.subr.mxu0 0.0
    %87 = vmatpush1.msra.mxu0 0.0
    %88 = vmatprep.subr.mxu0 0.0
    %89 = vmatpush1.msra.mxu0 0.0
    %90 = vmatprep.subr.mxu0 0.0
    %91 = vmatpush1.msra.mxu0 0.0
    %92 = vmatprep.subr.mxu0 0.0
    %93 = vmatpush1.msra.mxu0 0.0
    %94 = vmatprep.subr.mxu0 0.0
    %95 = vmatpush1.msra.mxu0 0.0
    %96 = vmatprep.subr.mxu0 0.0
    %97 = vmatpush1.msra.mxu0 0.0
    %98 = vmatprep.subr.mxu0 0.0
    %99 = vmatpush1.msra.mxu0 0.0
    %100 = vmatprep.subr.mxu0 0.0
    %101 = vmatpush1.msra.mxu0 0.0
    %102 = vmatprep.subr.mxu0 0.0
    %103 = vmatpush1.msra.mxu0 0.0
    %104 = vmatprep.subr.mxu0 0.0
    %105 = vmatpush1.msra.mxu0 0.0
    %106 = vmatprep.mubr.f32.mxu0 0.0
    %107 = vmatmul.mubr.f32.gmra.mrb[0].mxu0 %v37
    %v108 = vpop.f32.mrb[0].mxu0
    %v109 = vadd.f32 %v33, %v108
    %v110 = vpop.f32.mrb[0].mxu0
    %111 = vmatprep.mubr.f32.mxu0 0.0
    %112 = vmatmul.mubr.f32.gmra.mrb[0].mxu0 %v40
    %v113 = vpop.f32.mrb[0].mxu0
    %v114 = vadd.f32 %v33, %v113
    %v115 = vpop.f32.mrb[0].mxu0
    %116 = vdwg.mxu0
    %v117 = vxor.u32 %v109, 2147483648
    %v118 = vxor.u32 %v114, 2147483648
    %v119 = vmul.f32 %v117, 1.442695
    %v120 = vpow.pop %v119
    %v121 = vmul.f32 %v118, 1.442695
    %v122 = vpow.pop %v121
    %v123 = vadd.f32 %v120, 1.0
    %v124 = vadd.f32 %v122, 1.0
    %v125 = vrcp.pop %v123
    %v126 = vmul.f32 1.0, %v125
    %v127 = vrcp.pop %v124
    %v128 = vmul.f32 1.0, %v127
    %v129 = vld [vmem:[%s3] sm:$0xff]
    %v130 = vld [vmem:[%s3 + $0x8] sm:$0xff]
    %v131 = vld [vmem:[%s3 + $0x10] sm:$0xff]
    %v132 = vld [vmem:[%s3 + $0x18] sm:$0xff]
    %v133 = vld [vmem:[%s3 + $0x20] sm:$0xff]
    %v134 = vld [vmem:[%s3 + $0x28] sm:$0xff]
    %v135 = vld [vmem:[%s3 + $0x30] sm:$0xff]
    %v136 = vld [vmem:[%s3 + $0x38] sm:$0xff]
    %v137 = vld [vmem:[%s4] sm:$0x1]
    %v139 = vlaneseq
    %v140 = vshrl.u32 %v139, 7
    %v141 = vsub.s32 0, %v140
    %v142 = vrot.slane %v137, %v141
    %vm144 = vcmask 523264
    %v146 = vsel %vm144, %v126, 0
    %v149 = vsel %vm144, %v128, 0
    %151 = vmatprep.subr.mxu0 0.0
    %152 = vmatpush1.msra.mxu0 %v129
    %153 = vmatprep.subr.mxu0 0.0
    %154 = vmatpush1.msra.mxu0 %v130
    %155 = vmatprep.subr.mxu0 0.0
    %156 = vmatpush1.msra.mxu0 %v131
    %157 = vmatprep.subr.mxu0 0.0
    %158 = vmatpush1.msra.mxu0 %v132
    %159 = vmatprep.subr.mxu0 0.0
    %160 = vmatpush1.msra.mxu0 %v133
    %161 = vmatprep.subr.mxu0 0.0
    %162 = vmatpush1.msra.mxu0 %v134
    %163 = vmatprep.subr.mxu0 0.0
    %164 = vmatpush1.msra.mxu0 %v135
    %165 = vmatprep.subr.mxu0 0.0
    %166 = vmatpush1.msra.mxu0 %v136
    %167 = vmatprep.subr.mxu0 0.0
    %168 = vmatpush1.msra.mxu0 0.0
    %169 = vmatprep.subr.mxu0 0.0
    %170 = vmatpush1.msra.mxu0 0.0
    %171 = vmatprep.subr.mxu0 0.0
    %172 = vmatpush1.msra.mxu0 0.0
    %173 = vmatprep.subr.mxu0 0.0
    %174 = vmatpush1.msra.mxu0 0.0
    %175 = vmatprep.subr.mxu0 0.0
    %176 = vmatpush1.msra.mxu0 0.0
    %177 = vmatprep.subr.mxu0 0.0
    %178 = vmatpush1.msra.mxu0 0.0
    %179 = vmatprep.subr.mxu0 0.0
    %180 = vmatpush1.msra.mxu0 0.0
    %181 = vmatprep.subr.mxu0 0.0
    %182 = vmatpush1.msra.mxu0 0.0
    %183 = vmatprep.subr.mxu0 0.0
    %184 = vmatpush1.msra.mxu0 0.0
    %185 = vmatprep.subr.mxu0 0.0
    %186 = vmatpush1.msra.mxu0 0.0
    %187 = vmatprep.subr.mxu0 0.0
    %188 = vmatpush1.msra.mxu0 0.0
    %189 = vmatprep.subr.mxu0 0.0
    %190 = vmatpush1.msra.mxu0 0.0
    %191 = vmatprep.subr.mxu0 0.0
    %192 = vmatpush1.msra.mxu0 0.0
    %193 = vmatprep.subr.mxu0 0.0
    %194 = vmatpush1.msra.mxu0 0.0
    %195 = vmatprep.subr.mxu0 0.0
    %196 = vmatpush1.msra.mxu0 0.0
    %197 = vmatprep.subr.mxu0 0.0
    %198 = vmatpush1.msra.mxu0 0.0
    %199 = vmatprep.subr.mxu0 0.0
    %200 = vmatpush1.msra.mxu0 0.0
    %201 = vmatprep.subr.mxu0 0.0
    %202 = vmatpush1.msra.mxu0 0.0
    %203 = vmatprep.subr.mxu0 0.0
    %204 = vmatpush1.msra.mxu0 0.0
    %205 = vmatprep.subr.mxu0 0.0
    %206 = vmatpush1.msra.mxu0 0.0
    %207 = vmatprep.subr.mxu0 0.0
    %208 = vmatpush1.msra.mxu0 0.0
    %209 = vmatprep.subr.mxu0 0.0
    %210 = vmatpush1.msra.mxu0 0.0
    %211 = vmatprep.subr.mxu0 0.0
    %212 = vmatpush1.msra.mxu0 0.0
    %213 = vmatprep.subr.mxu0 0.0
    %214 = vmatpush1.msra.mxu0 0.0
    %215 = vmatprep.mubr.f32.mxu0 0.0
    %216 = vmatmul.mubr.f32.gmra.mrb[0].mxu0 %v146
    %v217 = vpop.f32.mrb[0].mxu0
    %v218 = vadd.f32 %v142, %v217
    %v219 = vpop.f32.mrb[0].mxu0
    %220 = vmatprep.mubr.f32.mxu0 0.0
    %221 = vmatmul.mubr.f32.gmra.mrb[0].mxu0 %v149
    %v222 = vpop.f32.mrb[0].mxu0
    %v223 = vadd.f32 %v142, %v222
    %v224 = vpop.f32.mrb[0].mxu0
    %225 = vdwg.mxu0
    %vm226 = vcmask 261120
    %227 = vst.msk [vmem:[#allocation2] sm:$0xff] %vm226, %v218
    %228 = vst.msk [vmem:[#allocation2 + $0x8] sm:$0xff] %vm226, %v223
    %v229 = vsel %vm226, %v218, -inf
    %230 = vmax.xlane.f32.xlu0 %v229
    %v231 = vpop.xlane.xlu0 %230
    %v232 = vsel %vm226, %v223, -inf
    %233 = vmax.xlane.f32.xlu0 %v232
    %v234 = vpop.xlane.xlu0 %233
    %v235 = vsub.f32 %v218, %v231
    %v236 = vsub.f32 %v223, %v234
    %v237 = vmul.f32 %v235, 1.442695
    %v238 = vpow.pop %v237
    %v239 = vmul.f32 %v236, 1.442695
    %v240 = vpow.pop %v239
    %v241 = vsel %vm226, %v238, 0.0
    %242 = vadd.xlane.f32.xlu0 %v241
    %v243 = vpop.xlane.xlu0 %242
    %v244 = vsel %vm226, %v240, 0.0
    %245 = vadd.xlane.f32.xlu0 %v244
    %v246 = vpop.xlane.xlu0 %245
    %v247 = vrcp.pop %v243
    %v248 = vrcp.pop %v246
    %v249 = vmul.f32 %v238, %v247
    %v250 = vmul.f32 %v240, %v248
    %251 = vst.msk [vmem:[#allocation4] sm:$0xff] %vm226, %v249
    %252 = vst.msk [vmem:[#allocation4 + $0x8] sm:$0xff] %vm226, %v250
    // Predicated region
    $region22: #{tpu_custom_call.1} parent=1 // pred_check
      _
    $region23: #{tpu_custom_call.1} parent=1 // pred_check_branch
      %254 = sbr.rel (0) target = $region25
    $region24: #{tpu_custom_call.1} parent=1 // pred_region
      %s256 = ssub.s32 256, 256
      %257 = vsyncadd [#allocation3], %s256
      %s258 = sshll.u32 [#allocation2], 4
      %s259 = int_to_ptr.vmem [resolvable:$true] %s258
      %264 = dma.vmem_to_hbm [thread:$0]  %s259, 256, %s5, [#allocation3], 128, 128, 8
    $region25: #{tpu_custom_call.1} parent=1 // pred_fallthru
      _
    // Predicated region
    $region26: #{tpu_custom_call.1} parent=1 // pred_check
      _
    $region27: #{tpu_custom_call.1} parent=1 // pred_check_branch
      %266 = sbr.rel (0) target = $region29
    $region28: #{tpu_custom_call.1} parent=1 // pred_region
      %s268 = ssub.s32 256, 256
      %269 = vsyncadd [#allocation5], %s268
      %s270 = sshll.u32 [#allocation4], 4
      %s271 = int_to_ptr.vmem [resolvable:$true] %s270
      %276 = dma.vmem_to_hbm [thread:$0]  %s271, 256, %s6, [#allocation5], 128, 128, 8
    $region29: #{tpu_custom_call.1} parent=1 // pred_fallthru
      _
    // Predicated region
    $region30: #{tpu_custom_call.1} parent=1 // pred_check
      _
    $region31: #{tpu_custom_call.1} parent=1 // pred_check_branch
      %278 = sbr.rel (0) target = $region33
    $region32: #{tpu_custom_call.1} parent=1 // pred_region
      %279 = dma.done [#allocation3], 256
    $region33: #{tpu_custom_call.1} parent=1 // pred_fallthru
      _
    // Predicated region
    $region34: #{tpu_custom_call.1} parent=1 // pred_check
      _
    $region35: #{tpu_custom_call.1} parent=1 // pred_check_branch
      %281 = sbr.rel (0) target = $region37
    $region36: #{tpu_custom_call.1} parent=1 // pred_region
      %282 = dma.done [#allocation5], 256
    $region37: #{tpu_custom_call.1} parent=1 // pred_fallthru
      _
    %283 = vsyncpa [#allocation3], 1
    %284 = vsyncpa [#allocation5], 1

</llo_original>
